<compile_context>
chip_gen: v7x
topology: tpu7x:2x2x1
jax: 0.10.0
libtpu: 0.0.40
codegen_flags: <defaults>
</compile_context>

<pallas_src>
import jax
import jax.numpy as jnp
from jax.experimental import pallas as pl
from jax.experimental.pallas import tpu as pltpu


def _round_up(n, m):
    return (n + m - 1) // m * m


def _linear1_kernel(x_ref, w_ref, b_ref, y_ref):
    # x_ref: (TB, 3)  w_ref: (1, 3)  b_ref: (1, 1) in SMEM  y_ref: (TB, 1)
    # 3-element dot on the VPU (sublane-broadcast weight row) + lane reduce.
    prod = x_ref[...] * w_ref[...]
    y_ref[...] = jnp.sum(prod, axis=-1, keepdims=True) + b_ref[0, 0]


def model_with_multiple_inputs(x1, x2, w1, b1, w2, b2, *, batch_tile=512):
    """Pallas forward of ModelWithMultipleInputs.

    Returns y1.squeeze() with y1 = x1 @ w1.T + b1.  The reference module also
    evaluates linear2(x2) but its result is discarded, so x2/w2/b2 are
    accepted only for signature parity and never computed on (dead code).
    """
    del x2, w2, b2  # linear2 output is discarded by the reference forward

    B, F = x1.shape
    x1 = x1.astype(jnp.float32)
    w_row = jnp.asarray(w1, jnp.float32).reshape(1, F)   # (1, 3)
    b_sc = jnp.asarray(b1, jnp.float32).reshape(1, 1)    # scalar -> SMEM

    if B <= batch_tile:
        # Single full-array block: exempt from the (8,128) rule, no padding.
        tb, Bp, x1p = B, B, x1
    else:
        # Batch grid: tile rows in multiples of 8 sublanes, pad only the tail.
        tb = batch_tile
        Bp = _round_up(B, tb)
        x1p = jnp.pad(x1, ((0, Bp - B), (0, 0)))

    y = pl.pallas_call(
        _linear1_kernel,
        out_shape=jax.ShapeDtypeStruct((Bp, 1), jnp.float32),
        grid=(Bp // tb,),
        in_specs=[
            pl.BlockSpec((tb, F), lambda i: (i, 0)),                 # x1 rows
            pl.BlockSpec((1, F), lambda i: (0, 0)),                  # weight row
            pl.BlockSpec(memory_space=pltpu.MemorySpace.SMEM),       # bias scalar
        ],
        out_specs=pl.BlockSpec((tb, 1), lambda i: (i, 0)),
        compiler_params=pltpu.CompilerParams(
            dimension_semantics=("parallel",)),
    )(x1p, w_row, b_sc)

    return jnp.squeeze(y[:B, :1])  # matches torch's y1.squeeze()


if __name__ == "__main__":
    key = jax.random.PRNGKey(0)
    k1, k2, kw1, kb1, kw2, kb2 = jax.random.split(key, 6)

    B = 2
    x1 = jax.random.normal(k1, (B, 3), jnp.float32)
    x2 = jax.random.normal(k2, (B, 4), jnp.float32)

    # Deterministic nn.Linear-style init: U(-1/sqrt(fan_in), 1/sqrt(fan_in)).
    bound1 = 1.0 / (3.0 ** 0.5)
    bound2 = 1.0 / (4.0 ** 0.5)
    w1 = jax.random.uniform(kw1, (1, 3), jnp.float32, -bound1, bound1)
    b1 = jax.random.uniform(kb1, (1,), jnp.float32, -bound1, bound1)
    w2 = jax.random.uniform(kw2, (1, 4), jnp.float32, -bound2, bound2)
    b2 = jax.random.uniform(kb2, (1,), jnp.float32, -bound2, bound2)

    y = model_with_multiple_inputs(x1, x2, w1, b1, w2, b2)
    jax.block_until_ready(y)
    ref = jnp.squeeze(x1 @ w1.T + b1)
    assert y.shape == (B,), y.shape
    assert jnp.allclose(y, ref, atol=1e-5), (y, ref)

    # Also exercise the batch-grid (B > batch_tile) path with a tiny tile.
    Bg = 20
    x1g = jax.random.normal(k1, (Bg, 3), jnp.float32)
    x2g = jax.random.normal(k2, (Bg, 4), jnp.float32)
    yg = model_with_multiple_inputs(x1g, x2g, w1, b1, w2, b2, batch_tile=8)
    jax.block_until_ready(yg)
    refg = jnp.squeeze(x1g @ w1.T + b1)
    assert yg.shape == (Bg,), yg.shape
    assert jnp.allclose(yg, refg, atol=1e-5), (yg, refg)

    print("KERNEL_OK")
</pallas_src>

<mosaic_0001>
module attributes {stable_mosaic.version = 11 : i64} {
  func.func @_linear1_kernel(%arg0: i32, %arg1: memref<2x3xf32, #tpu.memory_space<vmem>>, %arg2: memref<1x3xf32, #tpu.memory_space<vmem>>, %arg3: memref<1x1xf32, #tpu.memory_space<smem>>, %arg4: memref<2x1xf32, #tpu.memory_space<vmem>>) attributes {dimension_semantics = [#tpu.dimension_semantics<parallel>], iteration_bounds = array<i64: 1>, scalar_prefetch = 0 : i64, scratch_operands = 0 : i64, tpu.core_type = #tpu.core_type<tc>, window_params = [{transform_indices = @transform_0, window_bounds = array<i64: 2, 3>}, {pipeline_mode = #tpu.pipeline_mode<synchronous>, transform_indices = @transform_1, window_bounds = array<i64: 1, 3>}, {transform_indices = @transform_2, window_bounds = array<i64: 1, 1>}, {transform_indices = @transform_3, window_bounds = array<i64: 2, 1>}]} {
    %c0 = arith.constant 0 : index
    %c0_0 = arith.constant 0 : index
    %0 = vector.load %arg1[%c0, %c0_0] : memref<2x3xf32, #tpu.memory_space<vmem>>, vector<2x3xf32>
    %c0_1 = arith.constant 0 : index
    %c0_2 = arith.constant 0 : index
    %1 = vector.load %arg2[%c0_1, %c0_2] : memref<1x3xf32, #tpu.memory_space<vmem>>, vector<1x3xf32>
    %2 = vector.broadcast %1 : vector<1x3xf32> to vector<2x3xf32>
    %3 = arith.mulf %0, %2 : vector<2x3xf32>
    %cst = arith.constant dense<0.000000e+00> : vector<2xf32>
    %4 = vector.multi_reduction <add>, %3, %cst [1] : vector<2x3xf32> to vector<2xf32>
    %5 = vector.shape_cast %4 : vector<2xf32> to vector<2x1xf32>
    %c0_3 = arith.constant 0 : index
    %c0_4 = arith.constant 0 : index
    %6 = memref.load %arg3[%c0_3, %c0_4] : memref<1x1xf32, #tpu.memory_space<smem>>
    %7 = vector.broadcast %6 : f32 to vector<2x1xf32>
    %8 = arith.addf %5, %7 : vector<2x1xf32>
    %c0_5 = arith.constant 0 : index
    %c0_6 = arith.constant 0 : index
    %9 = vector.load %arg4[%c0_5, %c0_6] : memref<2x1xf32, #tpu.memory_space<vmem>>, vector<2x1xf32>
    tpu.vector_store %arg4[%c0_5, %c0_6], %8 {strides = array<i32>} : memref<2x1xf32, #tpu.memory_space<vmem>>, vector<2x1xf32>,
    return
  }
  func.func @transform_0(%arg0: i32) -> (i32, i32) {
    %c0_i32 = arith.constant 0 : i32
    %c0_i32_0 = arith.constant 0 : i32
    return %arg0, %c0_i32 : i32, i32
  }
  func.func @transform_1(%arg0: i32) -> (i32, i32) {
    %c0_i32 = arith.constant 0 : i32
    %c0_i32_0 = arith.constant 0 : i32
    %c0_i32_1 = arith.constant 0 : i32
    return %c0_i32, %c0_i32_0 : i32, i32
  }
  func.func @transform_2(%arg0: i32) -> (i32, i32) {
    %c0_i32 = arith.constant 0 : i32
    %c0_i32_0 = arith.constant 0 : i32
    %c0_i32_1 = arith.constant 0 : i32
    return %c0_i32, %c0_i32_0 : i32, i32
  }
  func.func @transform_3(%arg0: i32) -> (i32, i32) {
    %c0_i32 = arith.constant 0 : i32
    %c0_i32_0 = arith.constant 0 : i32
    return %arg0, %c0_i32 : i32, i32
  }
}

</mosaic_0001>

<llo_original>
// kernel: tpu_custom_call.1
$region0: #{tpu_custom_call.1}
  #allocation0 [shape = 'u32[]', space=smem, size = 0x4, offset = 0x4, fixed_abs, tag = 'smem constant byte address 0x4 - core index']
  #allocation1 [shape = 'u32[144,128]{1,0:T(1,128)}', space=vmem, size = 0x12000, scoped, tag = 'internal scratch']
  #allocation2 [shape = 'f32[1,1]{1,0:T(1,128)S(6)}', space=smem, size = 0x200, scoped, tag = 'scoped memory for tpu_custom_call.1']
  %s0 = inlined_call_operand.vmem [shape: f32[2,3], index: 0, kind: input, shape index: {}]
  %s1 = inlined_call_operand.vmem [shape: f32[1,3], index: 1, kind: input, shape index: {}]
  %s2 = inlined_call_operand.<no memory space> [shape: f32[1,1], index: 2, kind: input, shape index: {}]
  %s3 = inlined_call_operand.vmem [shape: f32[2,1], index: 3, kind: output, shape index: {}]
  %s4 = sld [smem:[#allocation0]]
  $region22: #{tpu_custom_call.1} parent=0
    _
  %s6 = ssub.s32 1, %s4
  %s7 = scalar_select 0, %s6, %s4
  %8 = sst [smem:[#allocation2]] %s2
  // Predicated region
  $region2: #{tpu_custom_call.1} parent=0 // pred_check
    _
  $region3: #{tpu_custom_call.1} parent=0 // pred_check_branch
    %10 = sbr.rel (0) target = $region5
  $region4: #{tpu_custom_call.1} parent=0 // pred_region
    _
  $region5: #{tpu_custom_call.1} parent=0 // pred_fallthru
    _
  // Predicated region
  $region6: #{tpu_custom_call.1} parent=0 // pred_check
    _
  $region7: #{tpu_custom_call.1} parent=0 // pred_check_branch
    %12 = sbr.rel (0) target = $region9
  $region8: #{tpu_custom_call.1} parent=0 // pred_region
    _
  $region9: #{tpu_custom_call.1} parent=0 // pred_fallthru
    _
  // Predicated region
  $region10: #{tpu_custom_call.1} parent=0 // pred_check
    _
  $region11: #{tpu_custom_call.1} parent=0 // pred_check_branch
    %14 = sbr.rel (0) target = $region13
  $region12: #{tpu_custom_call.1} parent=0 // pred_region
    _
  $region13: #{tpu_custom_call.1} parent=0 // pred_fallthru
    _
  %v15 = vld [vmem:[%s0] sm:$0x3]
  %v16 = vld [vmem:[%s1] sm:$0x1]
  %v18 = vlaneseq
  %v19 = vshrl.u32 %v18, 7
  %v20 = vsub.s32 0, %v19
  %v21 = vrot.slane %v16, %v20
  %v23 = vmul.f32 %v15, %v21
  %vm24 = vcmask 17408
  %v25 = vsel %vm24, %v23, 0.0
  %26 = vadd.xlane.f32.xlu0 %v25
  %v27 = vpop.xlane.xlu0 %26
  %s28 = sld [smem:[#allocation2]]
  %v29 = vstv %s28
  %v30 = vadd.f32 %v27, %v29
  %vm31 = vcmask 1024
  %32 = vst.msk [vmem:[%s3] sm:$0x3] %vm31, %v30
  // Predicated region
  $region14: #{tpu_custom_call.1} parent=0 // pred_check
    _
  $region15: #{tpu_custom_call.1} parent=0 // pred_check_branch
    %34 = sbr.rel (0) target = $region17
  $region16: #{tpu_custom_call.1} parent=0 // pred_region
    _
  $region17: #{tpu_custom_call.1} parent=0 // pred_fallthru
    _
  // Predicated region
  $region18: #{tpu_custom_call.1} parent=0 // pred_check
    _
  $region19: #{tpu_custom_call.1} parent=0 // pred_check_branch
    %36 = sbr.rel (0) target = $region21
  $region20: #{tpu_custom_call.1} parent=0 // pred_region
    _
  $region21: #{tpu_custom_call.1} parent=0 // pred_fallthru
    _

</llo_original>
